<compile_context>
chip_gen: v7x
topology: tpu7x:2x2x1
jax: 0.10.0
libtpu: 0.0.40
codegen_flags: <defaults>
</compile_context>

<pallas_src>
import functools

import jax
import jax.numpy as jnp
from jax.experimental import pallas as pl
from jax.experimental.pallas import tpu as pltpu

LANE = 128
SUB = 8


def _round_up(n, m):
    return ((max(n, m) + m - 1) // m) * m


def rnn_kernel(x_ref, wih_ref, whh_ref, b_ref, o_ref):
    """Whole-sequence tanh RNN recurrence in a single kernel invocation.

    x_ref:   (T*Bp, Dp)  f32   padded inputs, flattened over (t, batch)
    wih_ref: (Dp, Hp)    f32   W_ih^T, zero-padded
    whh_ref: (Hp, Hp)    bf16  W_hh^T, zero-padded
    b_ref:   (1, Hp)     f32   b_ih + b_hh, zero-padded
    o_ref:   (T, Bp, Hp) f32   padded outputs (one full-vreg store per step)
    """
    T, Bp, _ = o_ref.shape

    # One batched MXU op for the entire input projection + bias; this is off
    # the serial critical path, so it stays in f32 for precision.
    pre = jnp.dot(x_ref[...], wih_ref[...],
                  preferred_element_type=jnp.float32) + b_ref[...]

    # t = 0: h_{-1} == 0, so the recurrent matmul is identically zero.
    h = jnp.tanh(pre[0:Bp])
    o_ref[0] = h

    # Serial recurrence: exactly one (Bp,Hp)@(Hp,Hp) dot per step, operands
    # in bf16 / accumulation in f32. W_hh^T is read from the ref inside the
    # dot (not hoisted into vregs). Statically unrolled (T is small).
    for t in range(1, T):
        rec = jnp.dot(h.astype(jnp.bfloat16), whh_ref[...],
                      preferred_element_type=jnp.float32)
        h = jnp.tanh(pre[t * Bp:(t + 1) * Bp] + rec)
        o_ref[t] = h


def prepare_params(w_ih, w_hh, b_ih, b_hh):
    """Build padded / transposed kernel parameters once per model."""
    H, D = w_ih.shape
    Dp = _round_up(D, LANE)
    Hp = _round_up(H, LANE)
    wih_p = jnp.zeros((Dp, Hp), jnp.float32).at[:D, :H].set(w_ih.T)
    whh_p = (jnp.zeros((Hp, Hp), jnp.float32)
             .at[:H, :H].set(w_hh.T)
             .astype(jnp.bfloat16))
    b_p = jnp.zeros((1, Hp), jnp.float32).at[0, :H].set(b_ih + b_hh)
    return wih_p, whh_p, b_p


@functools.partial(jax.jit, static_argnames=("hidden_size",))
def rnn_forward(x, wih_p, whh_p, b_p, *, hidden_size):
    """Elman RNN (single layer, tanh), zero initial hidden state.

    x: (T, B, D) float32 (time-major, like nn.RNN with batch_first=False)
    returns: (T*B, hidden_size) float32
    """
    T, B, D = x.shape
    Dp, Hp = wih_p.shape
    Bp = _round_up(B, SUB)

    # Zero-pad inputs to sublane/lane tiles and flatten (t, batch) so the
    # input projection is one well-shaped (T*Bp, Dp) @ (Dp, Hp) matmul.
    x_pad = jnp.zeros((T, Bp, Dp), jnp.float32).at[:, :B, :D].set(x)
    x2d = x_pad.reshape(T * Bp, Dp)

    out_pad = pl.pallas_call(
        rnn_kernel,
        out_shape=jax.ShapeDtypeStruct((T, Bp, Hp), jnp.float32),
        in_specs=[
            pl.BlockSpec(memory_space=pltpu.MemorySpace.VMEM),  # x2d
            pl.BlockSpec(memory_space=pltpu.MemorySpace.VMEM),  # W_ih^T
            pl.BlockSpec(memory_space=pltpu.MemorySpace.VMEM),  # W_hh^T (bf16)
            pl.BlockSpec(memory_space=pltpu.MemorySpace.VMEM),  # bias
        ],
        out_specs=pl.BlockSpec(memory_space=pltpu.MemorySpace.VMEM),
    )(x2d, wih_p, whh_p, b_p)

    # Drop padding, flatten to (T*B, H) like out.view(-1, hidden_size).
    return out_pad[:, :B, :hidden_size].reshape(T * B, hidden_size)


if __name__ == "__main__":
    # Hyper-params from the PyTorch script.
    batch_size = 1
    hidden_size = 4
    input_size = 4
    seq_len = 8

    key = jax.random.PRNGKey(0)
    kx, k1, k2, k3, k4 = jax.random.split(key, 5)

    # PyTorch nn.RNN init: uniform(-1/sqrt(H), 1/sqrt(H)) for all params.
    bound = 1.0 / (hidden_size ** 0.5)
    w_ih = jax.random.uniform(k1, (hidden_size, input_size), jnp.float32, -bound, bound)
    w_hh = jax.random.uniform(k2, (hidden_size, hidden_size), jnp.float32, -bound, bound)
    b_ih = jax.random.uniform(k3, (hidden_size,), jnp.float32, -bound, bound)
    b_hh = jax.random.uniform(k4, (hidden_size,), jnp.float32, -bound, bound)

    # One-hot-style input (seq_len, batch, input_size), time-major like nn.RNN.
    x = jax.nn.one_hot(
        jax.random.randint(kx, (seq_len, batch_size), 0, input_size),
        input_size,
        dtype=jnp.float32,
    )

    params = prepare_params(w_ih, w_hh, b_ih, b_hh)
    out = rnn_forward(x, *params, hidden_size=hidden_size)
    jax.block_until_ready(out)

    # Pure-JAX f32 reference of the recurrence (PyTorch semantics).
    def ref(x, w_ih, w_hh, b_ih, b_hh):
        h = jnp.zeros((batch_size, hidden_size), jnp.float32)
        outs = []
        for t in range(seq_len):
            h = jnp.tanh(x[t] @ w_ih.T + b_ih + h @ w_hh.T + b_hh)
            outs.append(h)
        return jnp.stack(outs).reshape(-1, hidden_size)

    ref_out = ref(x, w_ih, w_hh, b_ih, b_hh)
    assert out.shape == (seq_len * batch_size, hidden_size)
    # Tolerance relaxed from 1e-5 (bf16 operands in the recurrent dot).
    assert jnp.allclose(out, ref_out, atol=2e-2, rtol=2e-2), (
        jnp.max(jnp.abs(out - ref_out)))

    print("KERNEL_OK")
</pallas_src>

<mosaic_0001>
module attributes {stable_mosaic.version = 11 : i64} {
  func.func @rnn_kernel(%arg0: memref<64x128xf32, #tpu.memory_space<vmem>>, %arg1: memref<128x128xf32, #tpu.memory_space<vmem>>, %arg2: memref<128x128xbf16, #tpu.memory_space<vmem>>, %arg3: memref<1x128xf32, #tpu.memory_space<vmem>>, %arg4: memref<8x8x128xf32, #tpu.memory_space<vmem>>) attributes {dimension_semantics = [], scalar_prefetch = 0 : i64, scratch_operands = 0 : i64, tpu.core_type = #tpu.core_type<tc>} {
    %c0 = arith.constant 0 : index
    %c0_0 = arith.constant 0 : index
    %0 = vector.load %arg0[%c0, %c0_0] : memref<64x128xf32, #tpu.memory_space<vmem>>, vector<64x128xf32>
    %c0_1 = arith.constant 0 : index
    %c0_2 = arith.constant 0 : index
    %1 = vector.load %arg1[%c0_1, %c0_2] : memref<128x128xf32, #tpu.memory_space<vmem>>, vector<128x128xf32>
    %cst = arith.constant dense<0.000000e+00> : vector<64x128xf32>
    %2 = tpu.matmul %0, %1, %cst {dimension_numbers = #tpu.dot_dimension_numbers<[1], [0], [0], [1], [0, 0, 1, 1], [], []>} : vector<64x128xf32>, vector<128x128xf32>, vector<64x128xf32> -> vector<64x128xf32>
    %c0_3 = arith.constant 0 : index
    %c0_4 = arith.constant 0 : index
    %3 = vector.load %arg3[%c0_3, %c0_4] : memref<1x128xf32, #tpu.memory_space<vmem>>, vector<1x128xf32>
    %4 = vector.broadcast %3 : vector<1x128xf32> to vector<64x128xf32>
    %5 = arith.addf %2, %4 : vector<64x128xf32>
    %6 = vector.extract_strided_slice %5 {offsets = [0, 0], sizes = [8, 128], strides = [1, 1]} : vector<64x128xf32> to vector<8x128xf32>
    %7 = math.tanh %6 : vector<8x128xf32>
    %c0_5 = arith.constant 0 : index
    %c0_6 = arith.constant 0 : index
    %c0_7 = arith.constant 0 : index
    %8 = vector.load %arg4[%c0_5, %c0_6, %c0_7] : memref<8x8x128xf32, #tpu.memory_space<vmem>>, vector<1x8x128xf32>
    %9 = vector.shape_cast %8 : vector<1x8x128xf32> to vector<8x128xf32>
    %10 = vector.shape_cast %7 : vector<8x128xf32> to vector<1x8x128xf32>
    tpu.vector_store %arg4[%c0_5, %c0_6, %c0_7], %10 {strides = array<i32>} : memref<8x8x128xf32, #tpu.memory_space<vmem>>, vector<1x8x128xf32>,
    %11 = arith.truncf %7 : vector<8x128xf32> to vector<8x128xbf16>
    %c0_8 = arith.constant 0 : index
    %c0_9 = arith.constant 0 : index
    %12 = vector.load %arg2[%c0_8, %c0_9] : memref<128x128xbf16, #tpu.memory_space<vmem>>, vector<128x128xbf16>
    %cst_10 = arith.constant dense<0.000000e+00> : vector<8x128xf32>
    %13 = tpu.matmul %11, %12, %cst_10 {dimension_numbers = #tpu.dot_dimension_numbers<[1], [0], [0], [1], [0, 0, 1, 1], [], []>} : vector<8x128xbf16>, vector<128x128xbf16>, vector<8x128xf32> -> vector<8x128xf32>
    %14 = vector.extract_strided_slice %5 {offsets = [8, 0], sizes = [8, 128], strides = [1, 1]} : vector<64x128xf32> to vector<8x128xf32>
    %15 = arith.addf %14, %13 : vector<8x128xf32>
    %16 = math.tanh %15 : vector<8x128xf32>
    %c1 = arith.constant 1 : index
    %c0_11 = arith.constant 0 : index
    %c0_12 = arith.constant 0 : index
    %17 = vector.load %arg4[%c1, %c0_11, %c0_12] : memref<8x8x128xf32, #tpu.memory_space<vmem>>, vector<1x8x128xf32>
    %18 = vector.shape_cast %17 : vector<1x8x128xf32> to vector<8x128xf32>
    %19 = vector.shape_cast %16 : vector<8x128xf32> to vector<1x8x128xf32>
    tpu.vector_store %arg4[%c1, %c0_11, %c0_12], %19 {strides = array<i32>} : memref<8x8x128xf32, #tpu.memory_space<vmem>>, vector<1x8x128xf32>,
    %20 = arith.truncf %16 : vector<8x128xf32> to vector<8x128xbf16>
    %c0_13 = arith.constant 0 : index
    %c0_14 = arith.constant 0 : index
    %21 = vector.load %arg2[%c0_13, %c0_14] : memref<128x128xbf16, #tpu.memory_space<vmem>>, vector<128x128xbf16>
    %cst_15 = arith.constant dense<0.000000e+00> : vector<8x128xf32>
    %22 = tpu.matmul %20, %21, %cst_15 {dimension_numbers = #tpu.dot_dimension_numbers<[1], [0], [0], [1], [0, 0, 1, 1], [], []>} : vector<8x128xbf16>, vector<128x128xbf16>, vector<8x128xf32> -> vector<8x128xf32>
    %23 = vector.extract_strided_slice %5 {offsets = [16, 0], sizes = [8, 128], strides = [1, 1]} : vector<64x128xf32> to vector<8x128xf32>
    %24 = arith.addf %23, %22 : vector<8x128xf32>
    %25 = math.tanh %24 : vector<8x128xf32>
    %c2 = arith.constant 2 : index
    %c0_16 = arith.constant 0 : index
    %c0_17 = arith.constant 0 : index
    %26 = vector.load %arg4[%c2, %c0_16, %c0_17] : memref<8x8x128xf32, #tpu.memory_space<vmem>>, vector<1x8x128xf32>
    %27 = vector.shape_cast %26 : vector<1x8x128xf32> to vector<8x128xf32>
    %28 = vector.shape_cast %25 : vector<8x128xf32> to vector<1x8x128xf32>
    tpu.vector_store %arg4[%c2, %c0_16, %c0_17], %28 {strides = array<i32>} : memref<8x8x128xf32, #tpu.memory_space<vmem>>, vector<1x8x128xf32>,
    %29 = arith.truncf %25 : vector<8x128xf32> to vector<8x128xbf16>
    %c0_18 = arith.constant 0 : index
    %c0_19 = arith.constant 0 : index
    %30 = vector.load %arg2[%c0_18, %c0_19] : memref<128x128xbf16, #tpu.memory_space<vmem>>, vector<128x128xbf16>
    %cst_20 = arith.constant dense<0.000000e+00> : vector<8x128xf32>
    %31 = tpu.matmul %29, %30, %cst_20 {dimension_numbers = #tpu.dot_dimension_numbers<[1], [0], [0], [1], [0, 0, 1, 1], [], []>} : vector<8x128xbf16>, vector<128x128xbf16>, vector<8x128xf32> -> vector<8x128xf32>
    %32 = vector.extract_strided_slice %5 {offsets = [24, 0], sizes = [8, 128], strides = [1, 1]} : vector<64x128xf32> to vector<8x128xf32>
    %33 = arith.addf %32, %31 : vector<8x128xf32>
    %34 = math.tanh %33 : vector<8x128xf32>
    %c3 = arith.constant 3 : index
    %c0_21 = arith.constant 0 : index
    %c0_22 = arith.constant 0 : index
    %35 = vector.load %arg4[%c3, %c0_21, %c0_22] : memref<8x8x128xf32, #tpu.memory_space<vmem>>, vector<1x8x128xf32>
    %36 = vector.shape_cast %35 : vector<1x8x128xf32> to vector<8x128xf32>
    %37 = vector.shape_cast %34 : vector<8x128xf32> to vector<1x8x128xf32>
    tpu.vector_store %arg4[%c3, %c0_21, %c0_22], %37 {strides = array<i32>} : memref<8x8x128xf32, #tpu.memory_space<vmem>>, vector<1x8x128xf32>,
    %38 = arith.truncf %34 : vector<8x128xf32> to vector<8x128xbf16>
    %c0_23 = arith.constant 0 : index
    %c0_24 = arith.constant 0 : index
    %39 = vector.load %arg2[%c0_23, %c0_24] : memref<128x128xbf16, #tpu.memory_space<vmem>>, vector<128x128xbf16>
    %cst_25 = arith.constant dense<0.000000e+00> : vector<8x128xf32>
    %40 = tpu.matmul %38, %39, %cst_25 {dimension_numbers = #tpu.dot_dimension_numbers<[1], [0], [0], [1], [0, 0, 1, 1], [], []>} : vector<8x128xbf16>, vector<128x128xbf16>, vector<8x128xf32> -> vector<8x128xf32>
    %41 = vector.extract_strided_slice %5 {offsets = [32, 0], sizes = [8, 128], strides = [1, 1]} : vector<64x128xf32> to vector<8x128xf32>
    %42 = arith.addf %41, %40 : vector<8x128xf32>
    %43 = math.tanh %42 : vector<8x128xf32>
    %c4 = arith.constant 4 : index
    %c0_26 = arith.constant 0 : index
    %c0_27 = arith.constant 0 : index
    %44 = vector.load %arg4[%c4, %c0_26, %c0_27] : memref<8x8x128xf32, #tpu.memory_space<vmem>>, vector<1x8x128xf32>
    %45 = vector.shape_cast %44 : vector<1x8x128xf32> to vector<8x128xf32>
    %46 = vector.shape_cast %43 : vector<8x128xf32> to vector<1x8x128xf32>
    tpu.vector_store %arg4[%c4, %c0_26, %c0_27], %46 {strides = array<i32>} : memref<8x8x128xf32, #tpu.memory_space<vmem>>, vector<1x8x128xf32>,
    %47 = arith.truncf %43 : vector<8x128xf32> to vector<8x128xbf16>
    %c0_28 = arith.constant 0 : index
    %c0_29 = arith.constant 0 : index
    %48 = vector.load %arg2[%c0_28, %c0_29] : memref<128x128xbf16, #tpu.memory_space<vmem>>, vector<128x128xbf16>
    %cst_30 = arith.constant dense<0.000000e+00> : vector<8x128xf32>
    %49 = tpu.matmul %47, %48, %cst_30 {dimension_numbers = #tpu.dot_dimension_numbers<[1], [0], [0], [1], [0, 0, 1, 1], [], []>} : vector<8x128xbf16>, vector<128x128xbf16>, vector<8x128xf32> -> vector<8x128xf32>
    %50 = vector.extract_strided_slice %5 {offsets = [40, 0], sizes = [8, 128], strides = [1, 1]} : vector<64x128xf32> to vector<8x128xf32>
    %51 = arith.addf %50, %49 : vector<8x128xf32>
    %52 = math.tanh %51 : vector<8x128xf32>
    %c5 = arith.constant 5 : index
    %c0_31 = arith.constant 0 : index
    %c0_32 = arith.constant 0 : index
    %53 = vector.load %arg4[%c5, %c0_31, %c0_32] : memref<8x8x128xf32, #tpu.memory_space<vmem>>, vector<1x8x128xf32>
    %54 = vector.shape_cast %53 : vector<1x8x128xf32> to vector<8x128xf32>
    %55 = vector.shape_cast %52 : vector<8x128xf32> to vector<1x8x128xf32>
    tpu.vector_store %arg4[%c5, %c0_31, %c0_32], %55 {strides = array<i32>} : memref<8x8x128xf32, #tpu.memory_space<vmem>>, vector<1x8x128xf32>,
    %56 = arith.truncf %52 : vector<8x128xf32> to vector<8x128xbf16>
    %c0_33 = arith.constant 0 : index
    %c0_34 = arith.constant 0 : index
    %57 = vector.load %arg2[%c0_33, %c0_34] : memref<128x128xbf16, #tpu.memory_space<vmem>>, vector<128x128xbf16>
    %cst_35 = arith.constant dense<0.000000e+00> : vector<8x128xf32>
    %58 = tpu.matmul %56, %57, %cst_35 {dimension_numbers = #tpu.dot_dimension_numbers<[1], [0], [0], [1], [0, 0, 1, 1], [], []>} : vector<8x128xbf16>, vector<128x128xbf16>, vector<8x128xf32> -> vector<8x128xf32>
    %59 = vector.extract_strided_slice %5 {offsets = [48, 0], sizes = [8, 128], strides = [1, 1]} : vector<64x128xf32> to vector<8x128xf32>
    %60 = arith.addf %59, %58 : vector<8x128xf32>
    %61 = math.tanh %60 : vector<8x128xf32>
    %c6 = arith.constant 6 : index
    %c0_36 = arith.constant 0 : index
    %c0_37 = arith.constant 0 : index
    %62 = vector.load %arg4[%c6, %c0_36, %c0_37] : memref<8x8x128xf32, #tpu.memory_space<vmem>>, vector<1x8x128xf32>
    %63 = vector.shape_cast %62 : vector<1x8x128xf32> to vector<8x128xf32>
    %64 = vector.shape_cast %61 : vector<8x128xf32> to vector<1x8x128xf32>
    tpu.vector_store %arg4[%c6, %c0_36, %c0_37], %64 {strides = array<i32>} : memref<8x8x128xf32, #tpu.memory_space<vmem>>, vector<1x8x128xf32>,
    %65 = arith.truncf %61 : vector<8x128xf32> to vector<8x128xbf16>
    %c0_38 = arith.constant 0 : index
    %c0_39 = arith.constant 0 : index
    %66 = vector.load %arg2[%c0_38, %c0_39] : memref<128x128xbf16, #tpu.memory_space<vmem>>, vector<128x128xbf16>
    %cst_40 = arith.constant dense<0.000000e+00> : vector<8x128xf32>
    %67 = tpu.matmul %65, %66, %cst_40 {dimension_numbers = #tpu.dot_dimension_numbers<[1], [0], [0], [1], [0, 0, 1, 1], [], []>} : vector<8x128xbf16>, vector<128x128xbf16>, vector<8x128xf32> -> vector<8x128xf32>
    %68 = vector.extract_strided_slice %5 {offsets = [56, 0], sizes = [8, 128], strides = [1, 1]} : vector<64x128xf32> to vector<8x128xf32>
    %69 = arith.addf %68, %67 : vector<8x128xf32>
    %70 = math.tanh %69 : vector<8x128xf32>
    %c7 = arith.constant 7 : index
    %c0_41 = arith.constant 0 : index
    %c0_42 = arith.constant 0 : index
    %71 = vector.load %arg4[%c7, %c0_41, %c0_42] : memref<8x8x128xf32, #tpu.memory_space<vmem>>, vector<1x8x128xf32>
    %72 = vector.shape_cast %71 : vector<1x8x128xf32> to vector<8x128xf32>
    %73 = vector.shape_cast %70 : vector<8x128xf32> to vector<1x8x128xf32>
    tpu.vector_store %arg4[%c7, %c0_41, %c0_42], %73 {strides = array<i32>} : memref<8x8x128xf32, #tpu.memory_space<vmem>>, vector<1x8x128xf32>,
    return
  }
}

</mosaic_0001>

<llo_original>
// kernel: rnn_forward.1
$region0: #{rnn_forward.1}
  #allocation0 [shape = 'u32[]', space=smem, size = 0x4, offset = 0x4, fixed_abs, tag = 'smem constant byte address 0x4 - core index']
  #allocation1 [shape = 'u32[144,128]{1,0:T(1,128)}', space=vmem, size = 0x12000, scoped, tag = 'internal scratch']
  %s0 = inlined_call_operand.vmem [shape: f32[64,128], index: 0, kind: input, shape index: {}]
  %s1 = inlined_call_operand.hbm [shape: f32[128,128], index: 1, kind: input, shape index: {}]
  %s2 = inlined_call_operand.vmem [shape: bf16[128,128], index: 2, kind: input, shape index: {}]
  %s3 = inlined_call_operand.vmem [shape: f32[1,128], index: 3, kind: input, shape index: {}]
  %s4 = inlined_call_operand.vmem [shape: f32[8,8,128], index: 4, kind: output, shape index: {}]
  %s5 = sld [smem:[#allocation0]]
  $region30: #{rnn_forward.1} parent=0
    _
  %s7 = ssub.s32 1, %s5
  %s8 = scalar_select 0, %s7, %s5
  $region1: #{rnn_forward.1} parent=0
    #allocation2 [shape = 'u8[65536]{0}', space=vmem, size = 0x10000, scoped, tag = 'input window, operand 1, single buffered']
    #allocation3 [shape = 's32[1]{0}', space=sflag, size = 0x4, scoped, tag = 'scoped memory for rnn_forward.1']
    %9 = vsyncpa [#allocation3], 0
    // Predicated region
    $region2: #{rnn_forward.1} parent=1 // pred_check
      _
    $region3: #{rnn_forward.1} parent=1 // pred_check_branch
      %11 = sbr.rel (0) target = $region5
    $region4: #{rnn_forward.1} parent=1 // pred_region
      _
    $region5: #{rnn_forward.1} parent=1 // pred_fallthru
      _
    // Predicated region
    $region6: #{rnn_forward.1} parent=1 // pred_check
      _
    $region7: #{rnn_forward.1} parent=1 // pred_check_branch
      %13 = sbr.rel (0) target = $region9
    $region8: #{rnn_forward.1} parent=1 // pred_region
      %s15 = ssub.s32 2048, 2048
      %16 = vsyncadd [#allocation3], %s15
      %s17 = sshll.u32 [#allocation2], 4
      %s18 = int_to_ptr.vmem [resolvable:$true] %s17
      %23 = dma.hbm_to_vmem [thread:$0]  %s1, 2048, %s18, [#allocation3], 128, 128, 8
    $region9: #{rnn_forward.1} parent=1 // pred_fallthru
      _
    // Predicated region
    $region10: #{rnn_forward.1} parent=1 // pred_check
      _
    $region11: #{rnn_forward.1} parent=1 // pred_check_branch
      %25 = sbr.rel (0) target = $region13
    $region12: #{rnn_forward.1} parent=1 // pred_region
      _
    $region13: #{rnn_forward.1} parent=1 // pred_fallthru
      _
    // Predicated region
    $region14: #{rnn_forward.1} parent=1 // pred_check
      _
    $region15: #{rnn_forward.1} parent=1 // pred_check_branch
      %27 = sbr.rel (0) target = $region17
    $region16: #{rnn_forward.1} parent=1 // pred_region
      _
    $region17: #{rnn_forward.1} parent=1 // pred_fallthru
      _
    // Predicated region
    $region18: #{rnn_forward.1} parent=1 // pred_check
      _
    $region19: #{rnn_forward.1} parent=1 // pred_check_branch
      %29 = sbr.rel (0) target = $region21
    $region20: #{rnn_forward.1} parent=1 // pred_region
      %30 = dma.done [#allocation3], 2048
    $region21: #{rnn_forward.1} parent=1 // pred_fallthru
      _
    %v32 = vld [vmem:[%s0] sm:$0xff]
    %v33 = vld [vmem:[%s0 + $0x8] sm:$0xff]
    %v34 = vld [vmem:[%s0 + $0x10] sm:$0xff]
    %v35 = vld [vmem:[%s0 + $0x18] sm:$0xff]
    %v36 = vld [vmem:[%s0 + $0x20] sm:$0xff]
    %v37 = vld [vmem:[%s0 + $0x28] sm:$0xff]
    %v38 = vld [vmem:[%s0 + $0x30] sm:$0xff]
    %v39 = vld [vmem:[%s0 + $0x38] sm:$0xff]
    %v40 = vld [vmem:[#allocation2] sm:$0xff]
    %v41 = vld [vmem:[#allocation2 + $0x8] sm:$0xff]
    %v42 = vld [vmem:[#allocation2 + $0x10] sm:$0xff]
    %v43 = vld [vmem:[#allocation2 + $0x18] sm:$0xff]
    %v44 = vld [vmem:[#allocation2 + $0x20] sm:$0xff]
    %v45 = vld [vmem:[#allocation2 + $0x28] sm:$0xff]
    %v46 = vld [vmem:[#allocation2 + $0x30] sm:$0xff]
    %v47 = vld [vmem:[#allocation2 + $0x38] sm:$0xff]
    %v48 = vld [vmem:[#allocation2 + $0x40] sm:$0xff]
    %v49 = vld [vmem:[#allocation2 + $0x48] sm:$0xff]
    %v50 = vld [vmem:[#allocation2 + $0x50] sm:$0xff]
    %v51 = vld [vmem:[#allocation2 + $0x58] sm:$0xff]
    %v52 = vld [vmem:[#allocation2 + $0x60] sm:$0xff]
    %v53 = vld [vmem:[#allocation2 + $0x68] sm:$0xff]
    %v54 = vld [vmem:[#allocation2 + $0x70] sm:$0xff]
    %v55 = vld [vmem:[#allocation2 + $0x78] sm:$0xff]
    %v56 = vld [vmem:[%s3] sm:$0x1]
    %v58 = vlaneseq
    %v59 = vshrl.u32 %v58, 7
    %v60 = vsub.s32 0, %v59
    %v61 = vrot.slane %v56, %v60
    %63 = vmatprep.subr.mxu0 0.0
    %64 = vmatpush1.msra.mxu0 %v40
    %65 = vmatprep.subr.mxu0 0.0
    %66 = vmatpush1.msra.mxu0 %v41
    %67 = vmatprep.subr.mxu0 0.0
    %68 = vmatpush1.msra.mxu0 %v42
    %69 = vmatprep.subr.mxu0 0.0
    %70 = vmatpush1.msra.mxu0 %v43
    %71 = vmatprep.subr.mxu0 0.0
    %72 = vmatpush1.msra.mxu0 %v44
    %73 = vmatprep.subr.mxu0 0.0
    %74 = vmatpush1.msra.mxu0 %v45
    %75 = vmatprep.subr.mxu0 0.0
    %76 = vmatpush1.msra.mxu0 %v46
    %77 = vmatprep.subr.mxu0 0.0
    %78 = vmatpush1.msra.mxu0 %v47
    %79 = vmatprep.subr.mxu0 0.0
    %80 = vmatpush1.msra.mxu0 %v48
    %81 = vmatprep.subr.mxu0 0.0
    %82 = vmatpush1.msra.mxu0 %v49
    %83 = vmatprep.subr.mxu0 0.0
    %84 = vmatpush1.msra.mxu0 %v50
    %85 = vmatprep.subr.mxu0 0.0
    %86 = vmatpush1.msra.mxu0 %v51
    %87 = vmatprep.subr.mxu0 0.0
    %88 = vmatpush1.msra.mxu0 %v52
    %89 = vmatprep.subr.mxu0 0.0
    %90 = vmatpush1.msra.mxu0 %v53
    %91 = vmatprep.subr.mxu0 0.0
    %92 = vmatpush1.msra.mxu0 %v54
    %93 = vmatprep.subr.mxu0 0.0
    %94 = vmatpush1.msra.mxu0 %v55
    %95 = vmatprep.subr.mxu0 0.0
    %96 = vmatpush1.msra.mxu0 0.0
    %97 = vmatprep.subr.mxu0 0.0
    %98 = vmatpush1.msra.mxu0 0.0
    %99 = vmatprep.subr.mxu0 0.0
    %100 = vmatpush1.msra.mxu0 0.0
    %101 = vmatprep.subr.mxu0 0.0
    %102 = vmatpush1.msra.mxu0 0.0
    %103 = vmatprep.subr.mxu0 0.0
    %104 = vmatpush1.msra.mxu0 0.0
    %105 = vmatprep.subr.mxu0 0.0
    %106 = vmatpush1.msra.mxu0 0.0
    %107 = vmatprep.subr.mxu0 0.0
    %108 = vmatpush1.msra.mxu0 0.0
    %109 = vmatprep.subr.mxu0 0.0
    %110 = vmatpush1.msra.mxu0 0.0
    %111 = vmatprep.subr.mxu0 0.0
    %112 = vmatpush1.msra.mxu0 0.0
    %113 = vmatprep.subr.mxu0 0.0
    %114 = vmatpush1.msra.mxu0 0.0
    %115 = vmatprep.subr.mxu0 0.0
    %116 = vmatpush1.msra.mxu0 0.0
    %117 = vmatprep.subr.mxu0 0.0
    %118 = vmatpush1.msra.mxu0 0.0
    %119 = vmatprep.subr.mxu0 0.0
    %120 = vmatpush1.msra.mxu0 0.0
    %121 = vmatprep.subr.mxu0 0.0
    %122 = vmatpush1.msra.mxu0 0.0
    %123 = vmatprep.subr.mxu0 0.0
    %124 = vmatpush1.msra.mxu0 0.0
    %125 = vmatprep.subr.mxu0 0.0
    %126 = vmatpush1.msra.mxu0 0.0
    %127 = vmatprep.mubr.f32.mxu0 0.0
    %128 = vmatmul.mubr.f32.gmra.mrb[0].mxu0 %v32
    %v129 = vpop.f32.mrb[0].mxu0
    %v130 = vadd.f32 %v61, %v129
    %v131 = vpop.f32.mrb[0].mxu0
    %132 = vmatprep.mubr.f32.mxu0 0.0
    %133 = vmatmul.mubr.f32.gmra.mrb[0].mxu0 %v33
    %v134 = vpop.f32.mrb[0].mxu0
    %v135 = vadd.f32 %v61, %v134
    %v136 = vpop.f32.mrb[0].mxu0
    %137 = vmatprep.mubr.f32.mxu0 0.0
    %138 = vmatmul.mubr.f32.gmra.mrb[0].mxu0 %v34
    %v139 = vpop.f32.mrb[0].mxu0
    %v140 = vadd.f32 %v61, %v139
    %v141 = vpop.f32.mrb[0].mxu0
    %142 = vmatprep.mubr.f32.mxu0 0.0
    %143 = vmatmul.mubr.f32.gmra.mrb[0].mxu0 %v35
    %v144 = vpop.f32.mrb[0].mxu0
    %v145 = vadd.f32 %v61, %v144
    %v146 = vpop.f32.mrb[0].mxu0
    %147 = vmatprep.mubr.f32.mxu0 0.0
    %148 = vmatmul.mubr.f32.gmra.mrb[0].mxu0 %v36
    %v149 = vpop.f32.mrb[0].mxu0
    %v150 = vadd.f32 %v61, %v149
    %v151 = vpop.f32.mrb[0].mxu0
    %152 = vmatprep.mubr.f32.mxu0 0.0
    %153 = vmatmul.mubr.f32.gmra.mrb[0].mxu0 %v37
    %v154 = vpop.f32.mrb[0].mxu0
    %v155 = vadd.f32 %v61, %v154
    %v156 = vpop.f32.mrb[0].mxu0
    %157 = vmatprep.mubr.f32.mxu0 0.0
    %158 = vmatmul.mubr.f32.gmra.mrb[0].mxu0 %v38
    %v159 = vpop.f32.mrb[0].mxu0
    %v160 = vadd.f32 %v61, %v159
    %v161 = vpop.f32.mrb[0].mxu0
    %162 = vmatprep.mubr.f32.mxu0 0.0
    %163 = vmatmul.mubr.f32.gmra.mrb[0].mxu0 %v39
    %v164 = vpop.f32.mrb[0].mxu0
    %v165 = vadd.f32 %v61, %v164
    %v166 = vpop.f32.mrb[0].mxu0
    %167 = vdwg.mxu0
    %v168 = vtanh.pop %v130
    %169 = vst [vmem:[%s4] sm:$0xff] %v168
    %v170 = vpack.c.bf16 %v168, %v168
    %v171 = vld [vmem:[%s2] sm:$0xf]
    %v172 = vld [vmem:[%s2 + $0x4] sm:$0xf]
    %v173 = vld [vmem:[%s2 + $0x8] sm:$0xf]
    %v174 = vld [vmem:[%s2 + $0xc] sm:$0xf]
    %v175 = vld [vmem:[%s2 + $0x10] sm:$0xf]
    %v176 = vld [vmem:[%s2 + $0x14] sm:$0xf]
    %v177 = vld [vmem:[%s2 + $0x18] sm:$0xf]
    %v178 = vld [vmem:[%s2 + $0x1c] sm:$0xf]
    %v179 = vld [vmem:[%s2 + $0x20] sm:$0xf]
    %v180 = vld [vmem:[%s2 + $0x24] sm:$0xf]
    %v181 = vld [vmem:[%s2 + $0x28] sm:$0xf]
    %v182 = vld [vmem:[%s2 + $0x2c] sm:$0xf]
    %v183 = vld [vmem:[%s2 + $0x30] sm:$0xf]
    %v184 = vld [vmem:[%s2 + $0x34] sm:$0xf]
    %v185 = vld [vmem:[%s2 + $0x38] sm:$0xf]
    %v186 = vld [vmem:[%s2 + $0x3c] sm:$0xf]
    %v203 = vunpack.c.l.b16 %v171
    %v204 = vunpack.c.l.b16 %v172
    %v205 = vunpack.c.l.b16 %v173
    %v206 = vunpack.c.l.b16 %v174
    %v207 = vunpack.c.l.b16 %v175
    %v208 = vunpack.c.l.b16 %v176
    %v209 = vunpack.c.l.b16 %v177
    %v210 = vunpack.c.l.b16 %v178
    %v211 = vunpack.c.l.b16 %v179
    %v212 = vunpack.c.l.b16 %v180
    %v213 = vunpack.c.l.b16 %v181
    %v214 = vunpack.c.l.b16 %v182
    %v215 = vunpack.c.l.b16 %v183
    %v216 = vunpack.c.l.b16 %v184
    %v217 = vunpack.c.l.b16 %v185
    %v218 = vunpack.c.l.b16 %v186
    %v219 = vpack.c.b16 %v204, %v203
    %v220 = vpack.c.b16 %v206, %v205
    %v221 = vpack.c.b16 %v208, %v207
    %v222 = vpack.c.b16 %v210, %v209
    %v223 = vpack.c.b16 %v212, %v211
    %v224 = vpack.c.b16 %v214, %v213
    %v225 = vpack.c.b16 %v216, %v215
    %v226 = vpack.c.b16 %v218, %v217
    %235 = vmatprep.subr.bf16.mxu0 0
    %236 = vmatpush1.bf16.msra.mxu0 %v219
    %237 = vmatprep.subr.bf16.mxu0 0
    %238 = vmatpush1.bf16.msra.mxu0 %v220
    %239 = vmatprep.subr.bf16.mxu0 0
    %240 = vmatpush1.bf16.msra.mxu0 %v221
    %241 = vmatprep.subr.bf16.mxu0 0
    %242 = vmatpush1.bf16.msra.mxu0 %v222
    %243 = vmatprep.subr.bf16.mxu0 0
    %244 = vmatpush1.bf16.msra.mxu0 %v223
    %245 = vmatprep.subr.bf16.mxu0 0
    %246 = vmatpush1.bf16.msra.mxu0 %v224
    %247 = vmatprep.subr.bf16.mxu0 0
    %248 = vmatpush1.bf16.msra.mxu0 %v225
    %249 = vmatprep.subr.bf16.mxu0 0
    %250 = vmatpush1.bf16.msra.mxu0 %v226
    %251 = vmatprep.subr.bf16.mxu0 0
    %252 = vmatpush1.bf16.msra.mxu0 0
    %253 = vmatprep.subr.bf16.mxu0 0
    %254 = vmatpush1.bf16.msra.mxu0 0
    %255 = vmatprep.subr.bf16.mxu0 0
    %256 = vmatpush1.bf16.msra.mxu0 0
    %257 = vmatprep.subr.bf16.mxu0 0
    %258 = vmatpush1.bf16.msra.mxu0 0
    %259 = vmatprep.subr.bf16.mxu0 0
    %260 = vmatpush1.bf16.msra.mxu0 0
    %261 = vmatprep.subr.bf16.mxu0 0
    %262 = vmatpush1.bf16.msra.mxu0 0
    %263 = vmatprep.subr.bf16.mxu0 0
    %264 = vmatpush1.bf16.msra.mxu0 0
    %265 = vmatprep.subr.bf16.mxu0 0
    %266 = vmatpush1.bf16.msra.mxu0 0
    %267 = vmatprep.mubr.bf16.mxu0 0
    %268 = vmatmul.mubr.bf16.gmra.mrb[0].mxu0 %v170
    %v269 = vpop.f32.mrb[0].mxu0
    %v270 = vadd.f32 0.0, %v269
    %v271 = vpop.f32.mrb[0].mxu0
    %v272 = vpop.f32.mrb[0].mxu0
    %v273 = vpop.f32.mrb[0].mxu0
    %274 = vdwg.mxu0
    %v275 = vadd.f32 %v135, %v270
    %v276 = vtanh.pop %v275
    %s277 = scalar_lea.vmem %s4, 8
    %278 = vst [vmem:[%s277] sm:$0xff] %v276
    %v279 = vpack.c.bf16 %v276, %v276
    %v280 = vld [vmem:[%s2] sm:$0xf]
    %v281 = vld [vmem:[%s2 + $0x4] sm:$0xf]
    %v282 = vld [vmem:[%s2 + $0x8] sm:$0xf]
    %v283 = vld [vmem:[%s2 + $0xc] sm:$0xf]
    %v284 = vld [vmem:[%s2 + $0x10] sm:$0xf]
    %v285 = vld [vmem:[%s2 + $0x14] sm:$0xf]
    %v286 = vld [vmem:[%s2 + $0x18] sm:$0xf]
    %v287 = vld [vmem:[%s2 + $0x1c] sm:$0xf]
    %v288 = vld [vmem:[%s2 + $0x20] sm:$0xf]
    %v289 = vld [vmem:[%s2 + $0x24] sm:$0xf]
    %v290 = vld [vmem:[%s2 + $0x28] sm:$0xf]
    %v291 = vld [vmem:[%s2 + $0x2c] sm:$0xf]
    %v292 = vld [vmem:[%s2 + $0x30] sm:$0xf]
    %v293 = vld [vmem:[%s2 + $0x34] sm:$0xf]
    %v294 = vld [vmem:[%s2 + $0x38] sm:$0xf]
    %v295 = vld [vmem:[%s2 + $0x3c] sm:$0xf]
    %v312 = vunpack.c.l.b16 %v280
    %v313 = vunpack.c.l.b16 %v281
    %v314 = vunpack.c.l.b16 %v282
    %v315 = vunpack.c.l.b16 %v283
    %v316 = vunpack.c.l.b16 %v284
    %v317 = vunpack.c.l.b16 %v285
    %v318 = vunpack.c.l.b16 %v286
    %v319 = vunpack.c.l.b16 %v287
    %v320 = vunpack.c.l.b16 %v288
    %v321 = vunpack.c.l.b16 %v289
    %v322 = vunpack.c.l.b16 %v290
    %v323 = vunpack.c.l.b16 %v291
    %v324 = vunpack.c.l.b16 %v292
    %v325 = vunpack.c.l.b16 %v293
    %v326 = vunpack.c.l.b16 %v294
    %v327 = vunpack.c.l.b16 %v295
    %v328 = vpack.c.b16 %v313, %v312
    %v329 = vpack.c.b16 %v315, %v314
    %v330 = vpack.c.b16 %v317, %v316
    %v331 = vpack.c.b16 %v319, %v318
    %v332 = vpack.c.b16 %v321, %v320
    %v333 = vpack.c.b16 %v323, %v322
    %v334 = vpack.c.b16 %v325, %v324
    %v335 = vpack.c.b16 %v327, %v326
    %344 = vmatprep.subr.bf16.mxu0 0
    %345 = vmatpush1.bf16.msra.mxu0 %v328
    %346 = vmatprep.subr.bf16.mxu0 0
    %347 = vmatpush1.bf16.msra.mxu0 %v329
    %348 = vmatprep.subr.bf16.mxu0 0
    %349 = vmatpush1.bf16.msra.mxu0 %v330
    %350 = vmatprep.subr.bf16.mxu0 0
    %351 = vmatpush1.bf16.msra.mxu0 %v331
    %352 = vmatprep.subr.bf16.mxu0 0
    %353 = vmatpush1.bf16.msra.mxu0 %v332
    %354 = vmatprep.subr.bf16.mxu0 0
    %355 = vmatpush1.bf16.msra.mxu0 %v333
    %356 = vmatprep.subr.bf16.mxu0 0
    %357 = vmatpush1.bf16.msra.mxu0 %v334
    %358 = vmatprep.subr.bf16.mxu0 0
    %359 = vmatpush1.bf16.msra.mxu0 %v335
    %360 = vmatprep.subr.bf16.mxu0 0
    %361 = vmatpush1.bf16.msra.mxu0 0
    %362 = vmatprep.subr.bf16.mxu0 0
    %363 = vmatpush1.bf16.msra.mxu0 0
    %364 = vmatprep.subr.bf16.mxu0 0
    %365 = vmatpush1.bf16.msra.mxu0 0
    %366 = vmatprep.subr.bf16.mxu0 0
    %367 = vmatpush1.bf16.msra.mxu0 0
    %368 = vmatprep.subr.bf16.mxu0 0
    %369 = vmatpush1.bf16.msra.mxu0 0
    %370 = vmatprep.subr.bf16.mxu0 0
    %371 = vmatpush1.bf16.msra.mxu0 0
    %372 = vmatprep.subr.bf16.mxu0 0
    %373 = vmatpush1.bf16.msra.mxu0 0
    %374 = vmatprep.subr.bf16.mxu0 0
    %375 = vmatpush1.bf16.msra.mxu0 0
    %376 = vmatprep.mubr.bf16.mxu0 0
    %377 = vmatmul.mubr.bf16.gmra.mrb[0].mxu0 %v279
    %v378 = vpop.f32.mrb[0].mxu0
    %v379 = vadd.f32 0.0, %v378
    %v380 = vpop.f32.mrb[0].mxu0
    %v381 = vpop.f32.mrb[0].mxu0
    %v382 = vpop.f32.mrb[0].mxu0
    %383 = vdwg.mxu0
    %v384 = vadd.f32 %v140, %v379
    %v385 = vtanh.pop %v384
    %s386 = scalar_lea.vmem %s4, 16
    %387 = vst [vmem:[%s386] sm:$0xff] %v385
    %v388 = vpack.c.bf16 %v385, %v385
    %v389 = vld [vmem:[%s2] sm:$0xf]
    %v390 = vld [vmem:[%s2 + $0x4] sm:$0xf]
    %v391 = vld [vmem:[%s2 + $0x8] sm:$0xf]
    %v392 = vld [vmem:[%s2 + $0xc] sm:$0xf]
    %v393 = vld [vmem:[%s2 + $0x10] sm:$0xf]
    %v394 = vld [vmem:[%s2 + $0x14] sm:$0xf]
    %v395 = vld [vmem:[%s2 + $0x18] sm:$0xf]
    %v396 = vld [vmem:[%s2 + $0x1c] sm:$0xf]
    %v397 = vld [vmem:[%s2 + $0x20] sm:$0xf]
    %v398 = vld [vmem:[%s2 + $0x24] sm:$0xf]
    %v399 = vld [vmem:[%s2 + $0x28] sm:$0xf]
    %v400 = vld [vmem:[%s2 + $0x2c] sm:$0xf]
    %v401 = vld [vmem:[%s2 + $0x30] sm:$0xf]
    %v402 = vld [vmem:[%s2 + $0x34] sm:$0xf]
    %v403 = vld [vmem:[%s2 + $0x38] sm:$0xf]
    %v404 = vld [vmem:[%s2 + $0x3c] sm:$0xf]
    %v421 = vunpack.c.l.b16 %v389
    %v422 = vunpack.c.l.b16 %v390
    %v423 = vunpack.c.l.b16 %v391
    %v424 = vunpack.c.l.b16 %v392
    %v425 = vunpack.c.l.b16 %v393
    %v426 = vunpack.c.l.b16 %v394
    %v427 = vunpack.c.l.b16 %v395
    %v428 = vunpack.c.l.b16 %v396
    %v429 = vunpack.c.l.b16 %v397
    %v430 = vunpack.c.l.b16 %v398
    %v431 = vunpack.c.l.b16 %v399
    %v432 = vunpack.c.l.b16 %v400
    %v433 = vunpack.c.l.b16 %v401
    %v434 = vunpack.c.l.b16 %v402
    %v435 = vunpack.c.l.b16 %v403
    %v436 = vunpack.c.l.b16 %v404
    %v437 = vpack.c.b16 %v422, %v421
    %v438 = vpack.c.b16 %v424, %v423
    %v439 = vpack.c.b16 %v426, %v425
    %v440 = vpack.c.b16 %v428, %v427
    %v441 = vpack.c.b16 %v430, %v429
    %v442 = vpack.c.b16 %v432, %v431
    %v443 = vpack.c.b16 %v434, %v433
    %v444 = vpack.c.b16 %v436, %v435
    %453 = vmatprep.subr.bf16.mxu0 0
    %454 = vmatpush1.bf16.msra.mxu0 %v437
    %455 = vmatprep.subr.bf16.mxu0 0
    %456 = vmatpush1.bf16.msra.mxu0 %v438
    %457 = vmatprep.subr.bf16.mxu0 0
    %458 = vmatpush1.bf16.msra.mxu0 %v439
    %459 = vmatprep.subr.bf16.mxu0 0
    %460 = vmatpush1.bf16.msra.mxu0 %v440
    %461 = vmatprep.subr.bf16.mxu0 0
    %462 = vmatpush1.bf16.msra.mxu0 %v441
    %463 = vmatprep.subr.bf16.mxu0 0
    %464 = vmatpush1.bf16.msra.mxu0 %v442
    %465 = vmatprep.subr.bf16.mxu0 0
    %466 = vmatpush1.bf16.msra.mxu0 %v443
    %467 = vmatprep.subr.bf16.mxu0 0
    %468 = vmatpush1.bf16.msra.mxu0 %v444
    %469 = vmatprep.subr.bf16.mxu0 0
    %470 = vmatpush1.bf16.msra.mxu0 0
    %471 = vmatprep.subr.bf16.mxu0 0
    %472 = vmatpush1.bf16.msra.mxu0 0
    %473 = vmatprep.subr.bf16.mxu0 0
    %474 = vmatpush1.bf16.msra.mxu0 0
    %475 = vmatprep.subr.bf16.mxu0 0
    %476 = vmatpush1.bf16.msra.mxu0 0
    %477 = vmatprep.subr.bf16.mxu0 0
    %478 = vmatpush1.bf16.msra.mxu0 0
    %479 = vmatprep.subr.bf16.mxu0 0
    %480 = vmatpush1.bf16.msra.mxu0 0
    %481 = vmatprep.subr.bf16.mxu0 0
    %482 = vmatpush1.bf16.msra.mxu0 0
    %483 = vmatprep.subr.bf16.mxu0 0
    %484 = vmatpush1.bf16.msra.mxu0 0
    %485 = vmatprep.mubr.bf16.mxu0 0
    %486 = vmatmul.mubr.bf16.gmra.mrb[0].mxu0 %v388
    %v487 = vpop.f32.mrb[0].mxu0
    %v488 = vadd.f32 0.0, %v487
    %v489 = vpop.f32.mrb[0].mxu0
    %v490 = vpop.f32.mrb[0].mxu0
    %v491 = vpop.f32.mrb[0].mxu0
    %492 = vdwg.mxu0
    %v493 = vadd.f32 %v145, %v488
    %v494 = vtanh.pop %v493
    %s495 = scalar_lea.vmem %s4, 24
    %496 = vst [vmem:[%s495] sm:$0xff] %v494
    %v497 = vpack.c.bf16 %v494, %v494
    %v498 = vld [vmem:[%s2] sm:$0xf]
    %v499 = vld [vmem:[%s2 + $0x4] sm:$0xf]
    %v500 = vld [vmem:[%s2 + $0x8] sm:$0xf]
    %v501 = vld [vmem:[%s2 + $0xc] sm:$0xf]
    %v502 = vld [vmem:[%s2 + $0x10] sm:$0xf]
    %v503 = vld [vmem:[%s2 + $0x14] sm:$0xf]
    %v504 = vld [vmem:[%s2 + $0x18] sm:$0xf]
    %v505 = vld [vmem:[%s2 + $0x1c] sm:$0xf]
    %v506 = vld [vmem:[%s2 + $0x20] sm:$0xf]
    %v507 = vld [vmem:[%s2 + $0x24] sm:$0xf]
    %v508 = vld [vmem:[%s2 + $0x28] sm:$0xf]
    %v509 = vld [vmem:[%s2 + $0x2c] sm:$0xf]
    %v510 = vld [vmem:[%s2 + $0x30] sm:$0xf]
    %v511 = vld [vmem:[%s2 + $0x34] sm:$0xf]
    %v512 = vld [vmem:[%s2 + $0x38] sm:$0xf]
    %v513 = vld [vmem:[%s2 + $0x3c] sm:$0xf]
    %v530 = vunpack.c.l.b16 %v498
    %v531 = vunpack.c.l.b16 %v499
    %v532 = vunpack.c.l.b16 %v500
    %v533 = vunpack.c.l.b16 %v501
    %v534 = vunpack.c.l.b16 %v502
    %v535 = vunpack.c.l.b16 %v503
    %v536 = vunpack.c.l.b16 %v504
    %v537 = vunpack.c.l.b16 %v505
    %v538 = vunpack.c.l.b16 %v506
    %v539 = vunpack.c.l.b16 %v507
    %v540 = vunpack.c.l.b16 %v508
    %v541 = vunpack.c.l.b16 %v509
    %v542 = vunpack.c.l.b16 %v510
    %v543 = vunpack.c.l.b16 %v511
    %v544 = vunpack.c.l.b16 %v512
    %v545 = vunpack.c.l.b16 %v513
    %v546 = vpack.c.b16 %v531, %v530
    %v547 = vpack.c.b16 %v533, %v532
    %v548 = vpack.c.b16 %v535, %v534
    %v549 = vpack.c.b16 %v537, %v536
    %v550 = vpack.c.b16 %v539, %v538
    %v551 = vpack.c.b16 %v541, %v540
    %v552 = vpack.c.b16 %v543, %v542
    %v553 = vpack.c.b16 %v545, %v544
    %562 = vmatprep.subr.bf16.mxu0 0
    %563 = vmatpush1.bf16.msra.mxu0 %v546
    %564 = vmatprep.subr.bf16.mxu0 0
    %565 = vmatpush1.bf16.msra.mxu0 %v547
    %566 = vmatprep.subr.bf16.mxu0 0
    %567 = vmatpush1.bf16.msra.mxu0 %v548
    %568 = vmatprep.subr.bf16.mxu0 0
    %569 = vmatpush1.bf16.msra.mxu0 %v549
    %570 = vmatprep.subr.bf16.mxu0 0
    %571 = vmatpush1.bf16.msra.mxu0 %v550
    %572 = vmatprep.subr.bf16.mxu0 0
    %573 = vmatpush1.bf16.msra.mxu0 %v551
    %574 = vmatprep.subr.bf16.mxu0 0
    %575 = vmatpush1.bf16.msra.mxu0 %v552
    %576 = vmatprep.subr.bf16.mxu0 0
    %577 = vmatpush1.bf16.msra.mxu0 %v553
    %578 = vmatprep.subr.bf16.mxu0 0
    %579 = vmatpush1.bf16.msra.mxu0 0
    %580 = vmatprep.subr.bf16.mxu0 0
    %581 = vmatpush1.bf16.msra.mxu0 0
    %582 = vmatprep.subr.bf16.mxu0 0
    %583 = vmatpush1.bf16.msra.mxu0 0
    %584 = vmatprep.subr.bf16.mxu0 0
    %585 = vmatpush1.bf16.msra.mxu0 0
    %586 = vmatprep.subr.bf16.mxu0 0
    %587 = vmatpush1.bf16.msra.mxu0 0
    %588 = vmatprep.subr.bf16.mxu0 0
    %589 = vmatpush1.bf16.msra.mxu0 0
    %590 = vmatprep.subr.bf16.mxu0 0
    %591 = vmatpush1.bf16.msra.mxu0 0
    %592 = vmatprep.subr.bf16.mxu0 0
    %593 = vmatpush1.bf16.msra.mxu0 0
    %594 = vmatprep.mubr.bf16.mxu0 0
    %595 = vmatmul.mubr.bf16.gmra.mrb[0].mxu0 %v497
    %v596 = vpop.f32.mrb[0].mxu0
    %v597 = vadd.f32 0.0, %v596
    %v598 = vpop.f32.mrb[0].mxu0
    %v599 = vpop.f32.mrb[0].mxu0
    %v600 = vpop.f32.mrb[0].mxu0
    %601 = vdwg.mxu0
    %v602 = vadd.f32 %v150, %v597
    %v603 = vtanh.pop %v602
    %s604 = scalar_lea.vmem %s4, 32
    %605 = vst [vmem:[%s604] sm:$0xff] %v603
    %v606 = vpack.c.bf16 %v603, %v603
    %v607 = vld [vmem:[%s2] sm:$0xf]
    %v608 = vld [vmem:[%s2 + $0x4] sm:$0xf]
    %v609 = vld [vmem:[%s2 + $0x8] sm:$0xf]
    %v610 = vld [vmem:[%s2 + $0xc] sm:$0xf]
    %v611 = vld [vmem:[%s2 + $0x10] sm:$0xf]
    %v612 = vld [vmem:[%s2 + $0x14] sm:$0xf]
    %v613 = vld [vmem:[%s2 + $0x18] sm:$0xf]
    %v614 = vld [vmem:[%s2 + $0x1c] sm:$0xf]
    %v615 = vld [vmem:[%s2 + $0x20] sm:$0xf]
    %v616 = vld [vmem:[%s2 + $0x24] sm:$0xf]
    %v617 = vld [vmem:[%s2 + $0x28] sm:$0xf]
    %v618 = vld [vmem:[%s2 + $0x2c] sm:$0xf]
    %v619 = vld [vmem:[%s2 + $0x30] sm:$0xf]
    %v620 = vld [vmem:[%s2 + $0x34] sm:$0xf]
    %v621 = vld [vmem:[%s2 + $0x38] sm:$0xf]
    %v622 = vld [vmem:[%s2 + $0x3c] sm:$0xf]
    %v639 = vunpack.c.l.b16 %v607
    %v640 = vunpack.c.l.b16 %v608
    %v641 = vunpack.c.l.b16 %v609
    %v642 = vunpack.c.l.b16 %v610
    %v643 = vunpack.c.l.b16 %v611
    %v644 = vunpack.c.l.b16 %v612
    %v645 = vunpack.c.l.b16 %v613
    %v646 = vunpack.c.l.b16 %v614
    %v647 = vunpack.c.l.b16 %v615
    %v648 = vunpack.c.l.b16 %v616
    %v649 = vunpack.c.l.b16 %v617
    %v650 = vunpack.c.l.b16 %v618
    %v651 = vunpack.c.l.b16 %v619
    %v652 = vunpack.c.l.b16 %v620
    %v653 = vunpack.c.l.b16 %v621
    %v654 = vunpack.c.l.b16 %v622
    %v655 = vpack.c.b16 %v640, %v639
    %v656 = vpack.c.b16 %v642, %v641
    %v657 = vpack.c.b16 %v644, %v643
    %v658 = vpack.c.b16 %v646, %v645
    %v659 = vpack.c.b16 %v648, %v647
    %v660 = vpack.c.b16 %v650, %v649
    %v661 = vpack.c.b16 %v652, %v651
    %v662 = vpack.c.b16 %v654, %v653
    %671 = vmatprep.subr.bf16.mxu0 0
    %672 = vmatpush1.bf16.msra.mxu0 %v655
    %673 = vmatprep.subr.bf16.mxu0 0
    %674 = vmatpush1.bf16.msra.mxu0 %v656
    %675 = vmatprep.subr.bf16.mxu0 0
    %676 = vmatpush1.bf16.msra.mxu0 %v657
    %677 = vmatprep.subr.bf16.mxu0 0
    %678 = vmatpush1.bf16.msra.mxu0 %v658
    %679 = vmatprep.subr.bf16.mxu0 0
    %680 = vmatpush1.bf16.msra.mxu0 %v659
    %681 = vmatprep.subr.bf16.mxu0 0
    %682 = vmatpush1.bf16.msra.mxu0 %v660
    %683 = vmatprep.subr.bf16.mxu0 0
    %684 = vmatpush1.bf16.msra.mxu0 %v661
    %685 = vmatprep.subr.bf16.mxu0 0
    %686 = vmatpush1.bf16.msra.mxu0 %v662
    %687 = vmatprep.subr.bf16.mxu0 0
    %688 = vmatpush1.bf16.msra.mxu0 0
    %689 = vmatprep.subr.bf16.mxu0 0
    %690 = vmatpush1.bf16.msra.mxu0 0
    %691 = vmatprep.subr.bf16.mxu0 0
    %692 = vmatpush1.bf16.msra.mxu0 0
    %693 = vmatprep.subr.bf16.mxu0 0
    %694 = vmatpush1.bf16.msra.mxu0 0
    %695 = vmatprep.subr.bf16.mxu0 0
    %696 = vmatpush1.bf16.msra.mxu0 0
    %697 = vmatprep.subr.bf16.mxu0 0
    %698 = vmatpush1.bf16.msra.mxu0 0
    %699 = vmatprep.subr.bf16.mxu0 0
    %700 = vmatpush1.bf16.msra.mxu0 0
    %701 = vmatprep.subr.bf16.mxu0 0
    %702 = vmatpush1.bf16.msra.mxu0 0
    %703 = vmatprep.mubr.bf16.mxu0 0
    %704 = vmatmul.mubr.bf16.gmra.mrb[0].mxu0 %v606
    %v705 = vpop.f32.mrb[0].mxu0
    %v706 = vadd.f32 0.0, %v705
    %v707 = vpop.f32.mrb[0].mxu0
    %v708 = vpop.f32.mrb[0].mxu0
    %v709 = vpop.f32.mrb[0].mxu0
    %710 = vdwg.mxu0
    %v711 = vadd.f32 %v155, %v706
    %v712 = vtanh.pop %v711
    %s713 = scalar_lea.vmem %s4, 40
    %714 = vst [vmem:[%s713] sm:$0xff] %v712
    %v715 = vpack.c.bf16 %v712, %v712
    %v716 = vld [vmem:[%s2] sm:$0xf]
    %v717 = vld [vmem:[%s2 + $0x4] sm:$0xf]
    %v718 = vld [vmem:[%s2 + $0x8] sm:$0xf]
    %v719 = vld [vmem:[%s2 + $0xc] sm:$0xf]
    %v720 = vld [vmem:[%s2 + $0x10] sm:$0xf]
    %v721 = vld [vmem:[%s2 + $0x14] sm:$0xf]
    %v722 = vld [vmem:[%s2 + $0x18] sm:$0xf]
    %v723 = vld [vmem:[%s2 + $0x1c] sm:$0xf]
    %v724 = vld [vmem:[%s2 + $0x20] sm:$0xf]
    %v725 = vld [vmem:[%s2 + $0x24] sm:$0xf]
    %v726 = vld [vmem:[%s2 + $0x28] sm:$0xf]
    %v727 = vld [vmem:[%s2 + $0x2c] sm:$0xf]
    %v728 = vld [vmem:[%s2 + $0x30] sm:$0xf]
    %v729 = vld [vmem:[%s2 + $0x34] sm:$0xf]
    %v730 = vld [vmem:[%s2 + $0x38] sm:$0xf]
    %v731 = vld [vmem:[%s2 + $0x3c] sm:$0xf]
    %v748 = vunpack.c.l.b16 %v716
    %v749 = vunpack.c.l.b16 %v717
    %v750 = vunpack.c.l.b16 %v718
    %v751 = vunpack.c.l.b16 %v719
    %v752 = vunpack.c.l.b16 %v720
    %v753 = vunpack.c.l.b16 %v721
    %v754 = vunpack.c.l.b16 %v722
    %v755 = vunpack.c.l.b16 %v723
    %v756 = vunpack.c.l.b16 %v724
    %v757 = vunpack.c.l.b16 %v725
    %v758 = vunpack.c.l.b16 %v726
    %v759 = vunpack.c.l.b16 %v727
    %v760 = vunpack.c.l.b16 %v728
    %v761 = vunpack.c.l.b16 %v729
    %v762 = vunpack.c.l.b16 %v730
    %v763 = vunpack.c.l.b16 %v731
    %v764 = vpack.c.b16 %v749, %v748
    %v765 = vpack.c.b16 %v751, %v750
    %v766 = vpack.c.b16 %v753, %v752
    %v767 = vpack.c.b16 %v755, %v754
    %v768 = vpack.c.b16 %v757, %v756
    %v769 = vpack.c.b16 %v759, %v758
    %v770 = vpack.c.b16 %v761, %v760
    %v771 = vpack.c.b16 %v763, %v762
    %780 = vmatprep.subr.bf16.mxu0 0
    %781 = vmatpush1.bf16.msra.mxu0 %v764
    %782 = vmatprep.subr.bf16.mxu0 0
    %783 = vmatpush1.bf16.msra.mxu0 %v765
    %784 = vmatprep.subr.bf16.mxu0 0
    %785 = vmatpush1.bf16.msra.mxu0 %v766
    %786 = vmatprep.subr.bf16.mxu0 0
    %787 = vmatpush1.bf16.msra.mxu0 %v767
    %788 = vmatprep.subr.bf16.mxu0 0
    %789 = vmatpush1.bf16.msra.mxu0 %v768
    %790 = vmatprep.subr.bf16.mxu0 0
    %791 = vmatpush1.bf16.msra.mxu0 %v769
    %792 = vmatprep.subr.bf16.mxu0 0
    %793 = vmatpush1.bf16.msra.mxu0 %v770
    %794 = vmatprep.subr.bf16.mxu0 0
    %795 = vmatpush1.bf16.msra.mxu0 %v771
    %796 = vmatprep.subr.bf16.mxu0 0
    %797 = vmatpush1.bf16.msra.mxu0 0
    %798 = vmatprep.subr.bf16.mxu0 0
    %799 = vmatpush1.bf16.msra.mxu0 0
    %800 = vmatprep.subr.bf16.mxu0 0
    %801 = vmatpush1.bf16.msra.mxu0 0
    %802 = vmatprep.subr.bf16.mxu0 0
    %803 = vmatpush1.bf16.msra.mxu0 0
    %804 = vmatprep.subr.bf16.mxu0 0
    %805 = vmatpush1.bf16.msra.mxu0 0
    %806 = vmatprep.subr.bf16.mxu0 0
    %807 = vmatpush1.bf16.msra.mxu0 0
    %808 = vmatprep.subr.bf16.mxu0 0
    %809 = vmatpush1.bf16.msra.mxu0 0
    %810 = vmatprep.subr.bf16.mxu0 0
    %811 = vmatpush1.bf16.msra.mxu0 0
    %812 = vmatprep.mubr.bf16.mxu0 0
    %813 = vmatmul.mubr.bf16.gmra.mrb[0].mxu0 %v715
    %v814 = vpop.f32.mrb[0].mxu0
    %v815 = vadd.f32 0.0, %v814
    %v816 = vpop.f32.mrb[0].mxu0
    %v817 = vpop.f32.mrb[0].mxu0
    %v818 = vpop.f32.mrb[0].mxu0
    %819 = vdwg.mxu0
    %v820 = vadd.f32 %v160, %v815
    %v821 = vtanh.pop %v820
    %s822 = scalar_lea.vmem %s4, 48
    %823 = vst [vmem:[%s822] sm:$0xff] %v821
    %v824 = vpack.c.bf16 %v821, %v821
    %v825 = vld [vmem:[%s2] sm:$0xf]
    %v826 = vld [vmem:[%s2 + $0x4] sm:$0xf]
    %v827 = vld [vmem:[%s2 + $0x8] sm:$0xf]
    %v828 = vld [vmem:[%s2 + $0xc] sm:$0xf]
    %v829 = vld [vmem:[%s2 + $0x10] sm:$0xf]
    %v830 = vld [vmem:[%s2 + $0x14] sm:$0xf]
    %v831 = vld [vmem:[%s2 + $0x18] sm:$0xf]
    %v832 = vld [vmem:[%s2 + $0x1c] sm:$0xf]
    %v833 = vld [vmem:[%s2 + $0x20] sm:$0xf]
    %v834 = vld [vmem:[%s2 + $0x24] sm:$0xf]
    %v835 = vld [vmem:[%s2 + $0x28] sm:$0xf]
    %v836 = vld [vmem:[%s2 + $0x2c] sm:$0xf]
    %v837 = vld [vmem:[%s2 + $0x30] sm:$0xf]
    %v838 = vld [vmem:[%s2 + $0x34] sm:$0xf]
    %v839 = vld [vmem:[%s2 + $0x38] sm:$0xf]
    %v840 = vld [vmem:[%s2 + $0x3c] sm:$0xf]
    %v857 = vunpack.c.l.b16 %v825
    %v858 = vunpack.c.l.b16 %v826
    %v859 = vunpack.c.l.b16 %v827
    %v860 = vunpack.c.l.b16 %v828
    %v861 = vunpack.c.l.b16 %v829
    %v862 = vunpack.c.l.b16 %v830
    %v863 = vunpack.c.l.b16 %v831
    %v864 = vunpack.c.l.b16 %v832
    %v865 = vunpack.c.l.b16 %v833
    %v866 = vunpack.c.l.b16 %v834
    %v867 = vunpack.c.l.b16 %v835
    %v868 = vunpack.c.l.b16 %v836
    %v869 = vunpack.c.l.b16 %v837
    %v870 = vunpack.c.l.b16 %v838
    %v871 = vunpack.c.l.b16 %v839
    %v872 = vunpack.c.l.b16 %v840
    %v873 = vpack.c.b16 %v858, %v857
    %v874 = vpack.c.b16 %v860, %v859
    %v875 = vpack.c.b16 %v862, %v861
    %v876 = vpack.c.b16 %v864, %v863
    %v877 = vpack.c.b16 %v866, %v865
    %v878 = vpack.c.b16 %v868, %v867
    %v879 = vpack.c.b16 %v870, %v869
    %v880 = vpack.c.b16 %v872, %v871
    %889 = vmatprep.subr.bf16.mxu0 0
    %890 = vmatpush1.bf16.msra.mxu0 %v873
    %891 = vmatprep.subr.bf16.mxu0 0
    %892 = vmatpush1.bf16.msra.mxu0 %v874
    %893 = vmatprep.subr.bf16.mxu0 0
    %894 = vmatpush1.bf16.msra.mxu0 %v875
    %895 = vmatprep.subr.bf16.mxu0 0
    %896 = vmatpush1.bf16.msra.mxu0 %v876
    %897 = vmatprep.subr.bf16.mxu0 0
    %898 = vmatpush1.bf16.msra.mxu0 %v877
    %899 = vmatprep.subr.bf16.mxu0 0
    %900 = vmatpush1.bf16.msra.mxu0 %v878
    %901 = vmatprep.subr.bf16.mxu0 0
    %902 = vmatpush1.bf16.msra.mxu0 %v879
    %903 = vmatprep.subr.bf16.mxu0 0
    %904 = vmatpush1.bf16.msra.mxu0 %v880
    %905 = vmatprep.subr.bf16.mxu0 0
    %906 = vmatpush1.bf16.msra.mxu0 0
    %907 = vmatprep.subr.bf16.mxu0 0
    %908 = vmatpush1.bf16.msra.mxu0 0
    %909 = vmatprep.subr.bf16.mxu0 0
    %910 = vmatpush1.bf16.msra.mxu0 0
    %911 = vmatprep.subr.bf16.mxu0 0
    %912 = vmatpush1.bf16.msra.mxu0 0
    %913 = vmatprep.subr.bf16.mxu0 0
    %914 = vmatpush1.bf16.msra.mxu0 0
    %915 = vmatprep.subr.bf16.mxu0 0
    %916 = vmatpush1.bf16.msra.mxu0 0
    %917 = vmatprep.subr.bf16.mxu0 0
    %918 = vmatpush1.bf16.msra.mxu0 0
    %919 = vmatprep.subr.bf16.mxu0 0
    %920 = vmatpush1.bf16.msra.mxu0 0
    %921 = vmatprep.mubr.bf16.mxu0 0
    %922 = vmatmul.mubr.bf16.gmra.mrb[0].mxu0 %v824
    %v923 = vpop.f32.mrb[0].mxu0
    %v924 = vadd.f32 0.0, %v923
    %v925 = vpop.f32.mrb[0].mxu0
    %v926 = vpop.f32.mrb[0].mxu0
    %v927 = vpop.f32.mrb[0].mxu0
    %928 = vdwg.mxu0
    %v929 = vadd.f32 %v165, %v924
    %v930 = vtanh.pop %v929
    %s931 = scalar_lea.vmem %s4, 56
    %932 = vst [vmem:[%s931] sm:$0xff] %v930
    // Predicated region
    $region22: #{rnn_forward.1} parent=1 // pred_check
      _
    $region23: #{rnn_forward.1} parent=1 // pred_check_branch
      %934 = sbr.rel (0) target = $region25
    $region24: #{rnn_forward.1} parent=1 // pred_region
      _
    $region25: #{rnn_forward.1} parent=1 // pred_fallthru
      _
    // Predicated region
    $region26: #{rnn_forward.1} parent=1 // pred_check
      _
    $region27: #{rnn_forward.1} parent=1 // pred_check_branch
      %936 = sbr.rel (0) target = $region29
    $region28: #{rnn_forward.1} parent=1 // pred_region
      _
    $region29: #{rnn_forward.1} parent=1 // pred_fallthru
      _
    %937 = vsyncpa [#allocation3], 1

</llo_original>
